<compile_context>
chip_gen: v6e
topology: v6e:2x2x1
jax: 0.10.0
libtpu: 0.0.40
codegen_flags: <defaults>
</compile_context>

<pallas_src>
import functools

import jax
import jax.numpy as jnp
from jax.experimental import pallas as pl
from jax.experimental.pallas import tpu as pltpu


# ---------------------------------------------------------------------------
# Kernel
# ---------------------------------------------------------------------------
def classifier_kernel(x_ref, w_ref, b_ref, out_ref, acc_ref, *, inv_t):
    # x_ref: (TB, TT, Dp)   w_ref: (Dp, Cp)   b_ref: (1, Cp)
    # out_ref: (TB, Cp)     acc_ref: (TB, Dp) f32 scratch (persists over T axis)
    ti = pl.program_id(1)

    @pl.when(ti == 0)
    def _init():
        acc_ref[...] = jnp.zeros_like(acc_ref)

    # Mask is all-ones by construction -> plain sum over the sequence tile.
    # Widen to f32 as part of the reduction (no separate full-tile cast pass).
    acc_ref[...] += jnp.sum(x_ref[...], axis=1, dtype=jnp.float32)

    @pl.when(ti == pl.num_programs(1) - 1)
    def _finalize():
        pooled = acc_ref[...] * inv_t                               # (TB, Dp)
        logits = jnp.dot(pooled, w_ref[...],
                         preferred_element_type=jnp.float32)        # (TB, Cp)
        out_ref[...] = (logits + b_ref[...]).astype(out_ref.dtype)


# ---------------------------------------------------------------------------
# Tiling helpers
# ---------------------------------------------------------------------------
def _round_up(n, m):
    return ((n + m - 1) // m) * m


def _sublane_align(dtype):
    """Minimum sublane multiple for dense (unmasked) vregs at this dtype."""
    return {4: 8, 2: 16, 1: 32}.get(jnp.dtype(dtype).itemsize, 8)


def _pick_tb(b, tb_target):
    """Batch tile: multiple of 8, <= tb_target, >= 2 blocks when B >= 16."""
    if b < 16:
        return _round_up(b, 8)                     # single small batch block
    tb = min(tb_target, _round_up(b, 16) // 2)     # guarantee >= 2 blocks
    return max(8, (tb // 8) * 8)


def _detect_vmem_capacity(default=64 * 1024 * 1024):
    """Per-core VMEM bytes; assume v7x's 64 MiB if detection is unavailable."""
    try:
        info = pltpu.get_tpu_info()
        cap = getattr(info, "vmem_capacity_bytes", None)
        if cap:
            return int(cap)
    except Exception:
        pass
    return default


# ---------------------------------------------------------------------------
# Wrapper
# ---------------------------------------------------------------------------
def classifier_forward(x, w, b, *, tb_target=128, tt_target=None,
                       tile_bytes=8 * 1024 * 1024):
    """x: (B, T, D), w: (D, C), b: (1, C) -> (B, C) logits."""
    B, T, D = x.shape
    C = w.shape[1]
    itemsize = jnp.dtype(x.dtype).itemsize
    align_t = _sublane_align(x.dtype)

    # Lane-dense padding: Dp for the x lanes / MXU contraction, Cp for the
    # output stores and the MXU RHS.  Zero rows/cols are exact for sum + dot.
    # (Under jit with static params these pads constant-fold.)
    Dp = _round_up(D, 128)
    Cp = _round_up(C, 128)
    w_p = jnp.pad(w.astype(jnp.float32), ((0, Dp - D), (0, Cp - C)))
    b_p = jnp.pad(b.reshape(1, -1).astype(jnp.float32), ((0, 0), (0, Cp - C)))

    # Tile selection.
    TB = _pick_tb(B, tb_target)
    B_p = _round_up(B, TB)
    if tt_target is None:
        tt_target = max(align_t, tile_bytes // max(1, TB * Dp * itemsize))
    TT = min(_round_up(tt_target, align_t), _round_up(T, align_t))
    TT = max(TT, align_t)
    T_p = _round_up(T, TT)

    # Zero-pad x to tile multiples; padded T/D contribute 0 to the sum and the
    # matmul, padded batch rows are sliced off after the call.
    x_p = x
    if (B_p, T_p, Dp) != (B, T, D):
        x_p = jnp.pad(x, ((0, B_p - B), (0, T_p - T), (0, Dp - D)))

    grid = (B_p // TB, T_p // TT)
    inv_t = 1.0 / T                           # mean over the ORIGINAL T

    # Generation-aware VMEM budget: 2x double-buffered x tiles, resident w/b,
    # double-buffered out, f32 accumulator, plus headroom; capped at 70% of
    # the detected per-core capacity (64 MiB assumed when unknown -> v7x safe).
    x_tile_bytes = TB * TT * Dp * itemsize
    resident = Dp * Cp * 4 + Cp * 4 + 2 * TB * Cp * 4 + TB * Dp * 4
    needed = 2 * x_tile_bytes + resident
    cap = _detect_vmem_capacity()
    vmem_limit = int(max(16 << 20, min(int(0.7 * cap), needed + (8 << 20))))

    kernel = functools.partial(classifier_kernel, inv_t=inv_t)
    out_shape = jax.ShapeDtypeStruct((B_p, Cp), jnp.float32)
    compiler_params = pltpu.CompilerParams(
        dimension_semantics=("parallel", "arbitrary"),
        vmem_limit_bytes=vmem_limit)

    def _run(single_buffer_consts):
        const_kwargs = ({"pipeline_mode": pl.Buffered(1)}
                        if single_buffer_consts else {})
        grid_spec = pltpu.PrefetchScalarGridSpec(
            num_scalar_prefetch=0,
            grid=grid,
            in_specs=[
                # x: tiled over (batch block, seq block), full Dp on the lanes.
                pl.BlockSpec((TB, TT, Dp), lambda bi, ti: (bi, ti, 0)),
                # w, b: fully resident constants across the whole grid.
                pl.BlockSpec((Dp, Cp), lambda bi, ti: (0, 0), **const_kwargs),
                pl.BlockSpec((1, Cp), lambda bi, ti: (0, 0), **const_kwargs),
            ],
            out_specs=pl.BlockSpec((TB, Cp), lambda bi, ti: (bi, 0)),
            scratch_shapes=[pltpu.VMEM((TB, Dp), jnp.float32)],
        )
        return pl.pallas_call(
            kernel,
            out_shape=out_shape,
            grid_spec=grid_spec,
            compiler_params=compiler_params,
        )(x_p, w_p, b_p)

    try:
        out_p = _run(True)
    except Exception:
        # Some jax versions reject Buffered(1) on constant operands; fall back
        # to default double-buffering (correctness identical, slightly more
        # VMEM used by the resident weights).
        out_p = _run(False)

    return out_p[:B, :C]


# ---------------------------------------------------------------------------
# Self-test
# ---------------------------------------------------------------------------
if __name__ == "__main__":
    key = jax.random.PRNGKey(0)
    kx, kw, kb, kx2 = jax.random.split(key, 4)

    # --- Test 1: aligned small shapes; tt_target=8 forces a 2-step reduction
    #     over T so the accumulator init/finalize path is exercised.
    B, T, D, C = 2, 16, 32, 4
    x = jax.random.normal(kx, (B, T, D), dtype=jnp.float32)
    w = jax.random.normal(kw, (D, C), dtype=jnp.float32) * 0.05
    b = jax.random.normal(kb, (1, C), dtype=jnp.float32) * 0.01

    out = jax.block_until_ready(classifier_forward(x, w, b, tt_target=8))

    # Pure-JAX reference matching the original module's semantics.
    mask = jnp.ones_like(x[:, :, 0])
    pooled = jnp.sum(x * mask[:, :, None], axis=1) / jnp.sum(
        mask, axis=1, keepdims=True)
    ref = pooled @ w + b
    assert out.shape == (B, C)
    assert jnp.allclose(out, ref, atol=1e-5, rtol=1e-5)

    # --- Test 2: awkward non-divisible shapes exercising the zero-padding
    #     path (B, T, D, C all misaligned).
    B2, T2, D2, C2 = 3, 13, 20, 5
    x2 = jax.random.normal(kx2, (B2, T2, D2), dtype=jnp.float32)
    w2 = jax.random.normal(kw, (D2, C2), dtype=jnp.float32) * 0.05
    b2 = jax.random.normal(kb, (1, C2), dtype=jnp.float32) * 0.01

    out2 = jax.block_until_ready(classifier_forward(x2, w2, b2, tt_target=8))
    ref2 = x2.mean(axis=1) @ w2 + b2
    assert out2.shape == (B2, C2)
    assert jnp.allclose(out2, ref2, atol=1e-5, rtol=1e-5)

    print("KERNEL_OK")
</pallas_src>

<mosaic_0001>
module attributes {stable_mosaic.version = 11 : i64} {
  func.func @classifier_kernel(%arg0: i32, %arg1: i32, %arg2: memref<8x8x128xf32, #tpu.memory_space<vmem>>, %arg3: memref<128x128xf32, #tpu.memory_space<vmem>>, %arg4: memref<1x128xf32, #tpu.memory_space<vmem>>, %arg5: memref<8x128xf32, #tpu.memory_space<vmem>>, %arg6: memref<8x128xf32, #tpu.memory_space<vmem>>) attributes {dimension_semantics = [#tpu.dimension_semantics<parallel>, #tpu.dimension_semantics<arbitrary>], iteration_bounds = array<i64: 1, 2>, scalar_prefetch = 0 : i64, scratch_operands = 1 : i64, tpu.core_type = #tpu.core_type<tc>, window_params = [{transform_indices = @transform_0, window_bounds = array<i64: 8, 8, 128>}, {pipeline_mode = #tpu.pipeline_mode<synchronous>, transform_indices = @transform_1, window_bounds = array<i64: 128, 128>}, {pipeline_mode = #tpu.pipeline_mode<synchronous>, transform_indices = @transform_2, window_bounds = array<i64: 1, 128>}, {transform_indices = @transform_3, window_bounds = array<i64: 8, 128>}]} {
    %c0_i32 = arith.constant 0 : i32
    %0 = arith.cmpi eq, %arg1, %c0_i32 : i32
    %1 = arith.extui %0 : i1 to i32
    %c0_i32_0 = arith.constant 0 : i32
    %2 = arith.cmpi ne, %1, %c0_i32_0 : i32
    scf.if %2 {
      %cst_8 = arith.constant 0.000000e+00 : f32
      %11 = vector.broadcast %cst_8 : f32 to vector<8x128xf32>
      %c0_9 = arith.constant 0 : index
      %c0_10 = arith.constant 0 : index
      %12 = vector.load %arg6[%c0_9, %c0_10] : memref<8x128xf32, #tpu.memory_space<vmem>>, vector<8x128xf32>
      tpu.vector_store %arg6[%c0_9, %c0_10], %11 {strides = array<i32>} : memref<8x128xf32, #tpu.memory_space<vmem>>, vector<8x128xf32>,
    } else {
    }
    %c0 = arith.constant 0 : index
    %c0_1 = arith.constant 0 : index
    %3 = vector.load %arg6[%c0, %c0_1] : memref<8x128xf32, #tpu.memory_space<vmem>>, vector<8x128xf32>
    %c0_2 = arith.constant 0 : index
    %c0_3 = arith.constant 0 : index
    %c0_4 = arith.constant 0 : index
    %4 = vector.load %arg2[%c0_2, %c0_3, %c0_4] : memref<8x8x128xf32, #tpu.memory_space<vmem>>, vector<8x8x128xf32>
    %cst = arith.constant dense<0.000000e+00> : vector<8x128xf32>
    %5 = vector.multi_reduction <add>, %4, %cst [1] : vector<8x8x128xf32> to vector<8x128xf32>
    %6 = arith.addf %3, %5 : vector<8x128xf32>
    %c0_5 = arith.constant 0 : index
    %c0_6 = arith.constant 0 : index
    %7 = vector.load %arg6[%c0_5, %c0_6] : memref<8x128xf32, #tpu.memory_space<vmem>>, vector<8x128xf32>
    tpu.vector_store %arg6[%c0_5, %c0_6], %6 {strides = array<i32>} : memref<8x128xf32, #tpu.memory_space<vmem>>, vector<8x128xf32>,
    %c1_i32 = arith.constant 1 : i32
    %8 = arith.cmpi eq, %arg1, %c1_i32 : i32
    %9 = arith.extui %8 : i1 to i32
    %c0_i32_7 = arith.constant 0 : i32
    %10 = arith.cmpi ne, %9, %c0_i32_7 : i32
    scf.if %10 {
      %c0_8 = arith.constant 0 : index
      %c0_9 = arith.constant 0 : index
      %11 = vector.load %arg6[%c0_8, %c0_9] : memref<8x128xf32, #tpu.memory_space<vmem>>, vector<8x128xf32>
      %cst_10 = arith.constant 6.250000e-02 : f32
      %12 = vector.broadcast %cst_10 : f32 to vector<8x128xf32>
      %13 = arith.mulf %11, %12 : vector<8x128xf32>
      %c0_11 = arith.constant 0 : index
      %c0_12 = arith.constant 0 : index
      %14 = vector.load %arg3[%c0_11, %c0_12] : memref<128x128xf32, #tpu.memory_space<vmem>>, vector<128x128xf32>
      %cst_13 = arith.constant dense<0.000000e+00> : vector<8x128xf32>
      %15 = tpu.matmul %13, %14, %cst_13 {dimension_numbers = #tpu.dot_dimension_numbers<[1], [0], [0], [1], [0, 0, 1, 1], [], []>} : vector<8x128xf32>, vector<128x128xf32>, vector<8x128xf32> -> vector<8x128xf32>
      %c0_14 = arith.constant 0 : index
      %c0_15 = arith.constant 0 : index
      %16 = vector.load %arg4[%c0_14, %c0_15] : memref<1x128xf32, #tpu.memory_space<vmem>>, vector<1x128xf32>
      %17 = vector.broadcast %16 : vector<1x128xf32> to vector<8x128xf32>
      %18 = arith.addf %15, %17 : vector<8x128xf32>
      %c0_16 = arith.constant 0 : index
      %c0_17 = arith.constant 0 : index
      %19 = vector.load %arg5[%c0_16, %c0_17] : memref<8x128xf32, #tpu.memory_space<vmem>>, vector<8x128xf32>
      tpu.vector_store %arg5[%c0_16, %c0_17], %18 {strides = array<i32>} : memref<8x128xf32, #tpu.memory_space<vmem>>, vector<8x128xf32>,
    } else {
    }
    return
  }
  func.func @transform_0(%arg0: i32, %arg1: i32) -> (i32, i32, i32) {
    %c0_i32 = arith.constant 0 : i32
    %c0_i32_0 = arith.constant 0 : i32
    return %arg0, %arg1, %c0_i32 : i32, i32, i32
  }
  func.func @transform_1(%arg0: i32, %arg1: i32) -> (i32, i32) {
    %c0_i32 = arith.constant 0 : i32
    %c0_i32_0 = arith.constant 0 : i32
    %c0_i32_1 = arith.constant 0 : i32
    return %c0_i32, %c0_i32_0 : i32, i32
  }
  func.func @transform_2(%arg0: i32, %arg1: i32) -> (i32, i32) {
    %c0_i32 = arith.constant 0 : i32
    %c0_i32_0 = arith.constant 0 : i32
    %c0_i32_1 = arith.constant 0 : i32
    return %c0_i32, %c0_i32_0 : i32, i32
  }
  func.func @transform_3(%arg0: i32, %arg1: i32) -> (i32, i32) {
    %c0_i32 = arith.constant 0 : i32
    %c0_i32_0 = arith.constant 0 : i32
    return %arg0, %c0_i32 : i32, i32
  }
}

module attributes {stable_mosaic.version = 11 : i64} {
  func.func @classifier_kernel(%arg0: i32, %arg1: i32, %arg2: memref<8x8x128xf32, #tpu.memory_space<vmem>>, %arg3: memref<128x128xf32, #tpu.memory_space<vmem>>, %arg4: memref<1x128xf32, #tpu.memory_space<vmem>>, %arg5: memref<8x128xf32, #tpu.memory_space<vmem>>, %arg6: memref<8x128xf32, #tpu.memory_space<vmem>>) attributes {dimension_semantics = [#tpu.dimension_semantics<parallel>, #tpu.dimension_semantics<arbitrary>], iteration_bounds = array<i64: 1, 2>, scalar_prefetch = 0 : i64, scratch_operands = 1 : i64, tpu.core_type = #tpu.core_type<tc>, window_params = [{transform_indices = @transform_0, window_bounds = array<i64: 8, 8, 128>}, {pipeline_mode = #tpu.pipeline_mode<synchronous>, transform_indices = @transform_1, window_bounds = array<i64: 128, 128>}, {pipeline_mode = #tpu.pipeline_mode<synchronous>, transform_indices = @transform_2, window_bounds = array<i64: 1, 128>}, {transform_indices = @transform_3, window_bounds = array<i64: 8, 128>}]} {
    %c0_i32 = arith.constant 0 : i32
    %0 = arith.cmpi eq, %arg1, %c0_i32 : i32
    %1 = arith.extui %0 : i1 to i32
    %c0_i32_0 = arith.constant 0 : i32
    %2 = arith.cmpi ne, %1, %c0_i32_0 : i32
    scf.if %2 {
      %cst_8 = arith.constant 0.000000e+00 : f32
      %11 = vector.broadcast %cst_8 : f32 to vector<8x128xf32>
      %c0_9 = arith.constant 0 : index
      %c0_10 = arith.constant 0 : index
      %12 = vector.load %arg6[%c0_9, %c0_10] : memref<8x128xf32, #tpu.memory_space<vmem>>, vector<8x128xf32>
      tpu.vector_store %arg6[%c0_9, %c0_10], %11 {strides = array<i32>} : memref<8x128xf32, #tpu.memory_space<vmem>>, vector<8x128xf32>,
    } else {
    }
    %c0 = arith.constant 0 : index
    %c0_1 = arith.constant 0 : index
    %3 = vector.load %arg6[%c0, %c0_1] : memref<8x128xf32, #tpu.memory_space<vmem>>, vector<8x128xf32>
    %c0_2 = arith.constant 0 : index
    %c0_3 = arith.constant 0 : index
    %c0_4 = arith.constant 0 : index
    %4 = vector.load %arg2[%c0_2, %c0_3, %c0_4] : memref<8x8x128xf32, #tpu.memory_space<vmem>>, vector<8x8x128xf32>
    %cst = arith.constant dense<0.000000e+00> : vector<8x128xf32>
    %5 = vector.multi_reduction <add>, %4, %cst [1] : vector<8x8x128xf32> to vector<8x128xf32>
    %6 = arith.addf %3, %5 : vector<8x128xf32>
    %c0_5 = arith.constant 0 : index
    %c0_6 = arith.constant 0 : index
    %7 = vector.load %arg6[%c0_5, %c0_6] : memref<8x128xf32, #tpu.memory_space<vmem>>, vector<8x128xf32>
    tpu.vector_store %arg6[%c0_5, %c0_6], %6 {strides = array<i32>} : memref<8x128xf32, #tpu.memory_space<vmem>>, vector<8x128xf32>,
    %c1_i32 = arith.constant 1 : i32
    %8 = arith.cmpi eq, %arg1, %c1_i32 : i32
    %9 = arith.extui %8 : i1 to i32
    %c0_i32_7 = arith.constant 0 : i32
    %10 = arith.cmpi ne, %9, %c0_i32_7 : i32
    scf.if %10 {
      %c0_8 = arith.constant 0 : index
      %c0_9 = arith.constant 0 : index
      %11 = vector.load %arg6[%c0_8, %c0_9] : memref<8x128xf32, #tpu.memory_space<vmem>>, vector<8x128xf32>
      %cst_10 = arith.constant 6.250000e-02 : f32
      %12 = vector.broadcast %cst_10 : f32 to vector<8x128xf32>
      %13 = arith.mulf %11, %12 : vector<8x128xf32>
      %c0_11 = arith.constant 0 : index
      %c0_12 = arith.constant 0 : index
      %14 = vector.load %arg3[%c0_11, %c0_12] : memref<128x128xf32, #tpu.memory_space<vmem>>, vector<128x128xf32>
      %cst_13 = arith.constant dense<0.000000e+00> : vector<8x128xf32>
      %15 = tpu.matmul %13, %14, %cst_13 {dimension_numbers = #tpu.dot_dimension_numbers<[1], [0], [0], [1], [0, 0, 1, 1], [], []>} : vector<8x128xf32>, vector<128x128xf32>, vector<8x128xf32> -> vector<8x128xf32>
      %c0_14 = arith.constant 0 : index
      %c0_15 = arith.constant 0 : index
      %16 = vector.load %arg4[%c0_14, %c0_15] : memref<1x128xf32, #tpu.memory_space<vmem>>, vector<1x128xf32>
      %17 = vector.broadcast %16 : vector<1x128xf32> to vector<8x128xf32>
      %18 = arith.addf %15, %17 : vector<8x128xf32>
      %c0_16 = arith.constant 0 : index
      %c0_17 = arith.constant 0 : index
      %19 = vector.load %arg5[%c0_16, %c0_17] : memref<8x128xf32, #tpu.memory_space<vmem>>, vector<8x128xf32>
      tpu.vector_store %arg5[%c0_16, %c0_17], %18 {strides = array<i32>} : memref<8x128xf32, #tpu.memory_space<vmem>>, vector<8x128xf32>,
    } else {
    }
    return
  }
  func.func @transform_0(%arg0: i32, %arg1: i32) -> (i32, i32, i32) {
    %c0_i32 = arith.constant 0 : i32
    %c0_i32_0 = arith.constant 0 : i32
    return %arg0, %arg1, %c0_i32 : i32, i32, i32
  }
  func.func @transform_1(%arg0: i32, %arg1: i32) -> (i32, i32) {
    %c0_i32 = arith.constant 0 : i32
    %c0_i32_0 = arith.constant 0 : i32
    %c0_i32_1 = arith.constant 0 : i32
    return %c0_i32, %c0_i32_0 : i32, i32
  }
  func.func @transform_2(%arg0: i32, %arg1: i32) -> (i32, i32) {
    %c0_i32 = arith.constant 0 : i32
    %c0_i32_0 = arith.constant 0 : i32
    %c0_i32_1 = arith.constant 0 : i32
    return %c0_i32, %c0_i32_0 : i32, i32
  }
  func.func @transform_3(%arg0: i32, %arg1: i32) -> (i32, i32) {
    %c0_i32 = arith.constant 0 : i32
    %c0_i32_0 = arith.constant 0 : i32
    return %arg0, %c0_i32 : i32, i32
  }
}

</mosaic_0001>

<llo_original>
// kernel: tpu_custom_call.1
$region0: #{tpu_custom_call.1}
  #allocation0 [shape = 'u32[]', space=smem, size = 0x4, offset = 0x4, fixed_abs, tag = 'smem constant byte address 0x4 - core index']
  #allocation1 [shape = 'u32[144,128]{1,0:T(1,128)}', space=vmem, size = 0x12000, scoped, tag = 'internal scratch']
  #allocation2 [shape = 'f32[8,128]{1,0:T(8,128)}', space=vmem, size = 0x1000, scoped, tag = 'scratch operand']
  %s0 = inlined_call_operand.hbm [shape: f32[8,16,128], index: 0, kind: input, shape index: {}]
  %s1 = inlined_call_operand.hbm [shape: f32[128,128], index: 1, kind: input, shape index: {}]
  %s2 = inlined_call_operand.vmem [shape: f32[1,128], index: 2, kind: input, shape index: {}]
  %s3 = inlined_call_operand.hbm [shape: f32[8,128], index: 3, kind: output, shape index: {}]
  %s4 = sld [smem:[#allocation0]]
  $region61: #{tpu_custom_call.1} parent=0
    _
  %s6 = ssub.s32 1, %s4
  %s7 = scalar_select 0, %s6, %s4
  $region1: #{tpu_custom_call.1} parent=0
    #allocation3 [shape = 'u8[65536]{0}', space=vmem, size = 0x10000, scoped, tag = 'input window, operand 0']
    #allocation4 [shape = 's32[2]{0}', space=sflag, size = 0x8, scoped, tag = 'scoped memory for tpu_custom_call.1']
    #allocation5 [shape = 's32[2]{0}', space=sflag, size = 0x8, scoped, tag = 'scoped memory for tpu_custom_call.1']
    #allocation6 [shape = 'u8[65536]{0}', space=vmem, size = 0x10000, scoped, tag = 'input window, operand 1, single buffered']
    #allocation7 [shape = 's32[1]{0}', space=sflag, size = 0x4, scoped, tag = 'scoped memory for tpu_custom_call.1']
    #allocation8 [shape = 'u8[4096]{0}', space=vmem, size = 0x1000, scoped, tag = 'output window, operand 0, single buffered']
    %8 = vsyncpa [#allocation4], 0
    %s9 = scalar_lea.sflag [#allocation4], 1
    %10 = vsyncpa %s9, 0
    %11 = vsyncpa [#allocation7], 0
    %12 = vsyncpa [#allocation5], 0
    loop: start=0, step=1, limit=4
    $region2: #{tpu_custom_call.1} parent=1 // loop_pre_header
      _
    $region3: #{tpu_custom_call.1} parent=1 // loop_header
      %s14 = sphi 0, %s18
      %p15 = scmp.ge.s32.totalorder %s14, 4
      %s21 = sphi 0, %s33
      %s22 = sphi 0, %s29
      %s23 = sphi 0, %s21
      %s24 = sphi 0, %s22
      %s25 = sphi 0, %s23
      %s26 = sphi 0, %s24
      %s38 = sphi 0, %s40
      %s41 = sphi 0, %s38
      %s42 = sphi 0, %s41
      %s58 = sphi 0, %s42
      %s62 = sphi 0, %s62
      %s64 = sphi 0, %s62
      %s65 = sphi 0, %s64
      %s79 = sphi 0, %s65
      %s83 = sphi 0, %s83
      %s85 = sphi 0, %s83
      %s86 = sphi 0, %s85
      %s100 = sphi 0, %s86
      %s106 = sphi 0, %s108
      %s109 = sphi 0, %s106
      %s110 = sphi 0, %s109
      %s126 = sphi 0, %s110
    $region4: #{tpu_custom_call.1} parent=1 // loop_header_branch
      %17 = sbr.rel (%p15) target = $region8
    $region5: #{tpu_custom_call.1} parent=1 // loop_body
      %s19 = ssub.s32 %s14, 1
      %s20 = ssub.s32 %s14, 2
      %s27 = sadd.s32 1, %s22
      %p28 = scmp.ge.s32.totalorder %s27, 2
      %s29 = scalar_select %p28, 0, %s27
      %s30 = sadd.s32 1, %s21
      %s31 = scalar_select %p28, %s30, %s21
      %p32 = scmp.ge.s32.totalorder %s31, 1
      %s33 = scalar_select %p32, 0, %s31
      %s34 = ssub.s32 %s21, %s33
      %s35 = ssub.s32 %s22, %s29
      %s36 = sor.u32 %s34, %s35
      %p37 = scmp.eq.s32.totalorder %s36, 0
      %s39 = sadd.s32 %s38, 1
      %s40 = scalar_select %p37, %s38, %s39
      %p43 = pneg %p37
      %p44 = scmp.eq.s32.totalorder %s14, 1
      %p45 = por %p43, %p44
      %p46 = scmp.ne.s32.totalorder %s38, %s41
      %p47 = scmp.eq.s32.totalorder %s14, 0
      %p48 = por %p46, %p47
      %p49 = scmp.ne.s32.totalorder %s38, %s41
      %p50 = scmp.eq.s32.totalorder %s19, 1
      %p51 = por %p49, %p50
      %p52 = scmp.ne.s32.totalorder %s41, %s42
      %p53 = scmp.eq.s32.totalorder %s19, 0
      %p54 = por %p52, %p53
      %p55 = scmp.ne.s32.totalorder %s41, %s42
      %p56 = scmp.eq.s32.totalorder %s20, 1
      %p57 = por %p55, %p56
      %p59 = scmp.ne.s32.totalorder %s42, %s58
      %p60 = scmp.eq.s32.totalorder %s20, 0
      %p61 = por %p59, %p60
      %s63 = sadd.s32 %s62, 1
      %p66 = scmp.eq.s32.totalorder %s14, 1
      %p67 = scmp.ne.s32.totalorder %s62, %s64
      %p68 = scmp.eq.s32.totalorder %s14, 0
      %p69 = por %p67, %p68
      %p70 = scmp.ne.s32.totalorder %s62, %s64
      %p71 = scmp.eq.s32.totalorder %s19, 1
      %p72 = por %p70, %p71
      %p73 = scmp.ne.s32.totalorder %s64, %s65
      %p74 = scmp.eq.s32.totalorder %s19, 0
      %p75 = por %p73, %p74
      %p76 = scmp.ne.s32.totalorder %s64, %s65
      %p77 = scmp.eq.s32.totalorder %s20, 1
      %p78 = por %p76, %p77
      %p80 = scmp.ne.s32.totalorder %s65, %s79
      %p81 = scmp.eq.s32.totalorder %s20, 0
      %p82 = por %p80, %p81
      %s84 = sadd.s32 %s83, 1
      %p87 = scmp.eq.s32.totalorder %s14, 1
      %p88 = scmp.ne.s32.totalorder %s83, %s85
      %p89 = scmp.eq.s32.totalorder %s14, 0
      %p90 = por %p88, %p89
      %p91 = scmp.ne.s32.totalorder %s83, %s85
      %p92 = scmp.eq.s32.totalorder %s19, 1
      %p93 = por %p91, %p92
      %p94 = scmp.ne.s32.totalorder %s85, %s86
      %p95 = scmp.eq.s32.totalorder %s19, 0
      %p96 = por %p94, %p95
      %p97 = scmp.ne.s32.totalorder %s85, %s86
      %p98 = scmp.eq.s32.totalorder %s20, 1
      %p99 = por %p97, %p98
      %p101 = scmp.ne.s32.totalorder %s86, %s100
      %p102 = scmp.eq.s32.totalorder %s20, 0
      %p103 = por %p101, %p102
      %s104 = ssub.s32 %s21, %s33
      %p105 = scmp.eq.s32.totalorder %s104, 0
      %s107 = sadd.s32 %s106, 1
      %s108 = scalar_select %p105, %s106, %s107
      %p111 = pneg %p105
      %p112 = scmp.eq.s32.totalorder %s14, 1
      %p113 = por %p111, %p112
      %p114 = scmp.ne.s32.totalorder %s106, %s109
      %p115 = scmp.eq.s32.totalorder %s14, 0
      %p116 = por %p114, %p115
      %p117 = scmp.ne.s32.totalorder %s106, %s109
      %p118 = scmp.eq.s32.totalorder %s19, 1
      %p119 = por %p117, %p118
      %p120 = scmp.ne.s32.totalorder %s109, %s110
      %p121 = scmp.eq.s32.totalorder %s19, 0
      %p122 = por %p120, %p121
      %p123 = scmp.ne.s32.totalorder %s109, %s110
      %p124 = scmp.eq.s32.totalorder %s20, 1
      %p125 = por %p123, %p124
      %p127 = scmp.ne.s32.totalorder %s110, %s126
      %p128 = scmp.eq.s32.totalorder %s20, 0
      %p129 = por %p127, %p128
      %p130 = scmp.le.s32.totalorder 1, %s14
      %p131 = scmp.lt.s32.totalorder %s14, 3
      %p132 = pnand %p130, %p131
      %p133 = pneg %p132
      // Predicated region
      $region9: #{tpu_custom_call.1} parent=5 // pred_check
        _
      $region10: #{tpu_custom_call.1} parent=5 // pred_check_branch
        %135 = sbr.rel (%p132) target = $region12
      $region11: #{tpu_custom_call.1} parent=5 // pred_region
        %s136 = ssub.s32 %s14, 1
        // Predicated region
        $region13: #{tpu_custom_call.1} parent=11 // pred_check
          %p137 = pneg %p75
        $region14: #{tpu_custom_call.1} parent=11 // pred_check_branch
          %139 = sbr.rel (%p137) target = $region16
        $region15: #{tpu_custom_call.1} parent=11 // pred_region
          %s141 = ssub.s32 2048, 2048
          %142 = vsyncadd [#allocation7], %s141
          %s143 = sshll.u32 [#allocation6], 4
          %s144 = int_to_ptr.vmem [resolvable:$true] %s143
          %149 = dma.hbm_to_vmem [thread:$0]  %s1, 2048, %s144, [#allocation7], 128, 128, 8
        $region16: #{tpu_custom_call.1} parent=11 // pred_fallthru
          _
        // Predicated region
        $region17: #{tpu_custom_call.1} parent=11 // pred_check
          %p150 = pneg %p96
        $region18: #{tpu_custom_call.1} parent=11 // pred_check_branch
          %152 = sbr.rel (%p150) target = $region20
        $region19: #{tpu_custom_call.1} parent=11 // pred_region
          _
        $region20: #{tpu_custom_call.1} parent=11 // pred_fallthru
          _
      $region12: #{tpu_custom_call.1} parent=5 // pred_fallthru
        _
      %p153 = scmp.lt.s32.totalorder %s14, 2
      // Predicated region
      $region21: #{tpu_custom_call.1} parent=5 // pred_check
        %p154 = pneg %p153
      $region22: #{tpu_custom_call.1} parent=5 // pred_check_branch
        %156 = sbr.rel (%p154) target = $region24
      $region23: #{tpu_custom_call.1} parent=5 // pred_region
        // Predicated region
        $region25: #{tpu_custom_call.1} parent=23 // pred_check
          %p157 = pneg %p48
        $region26: #{tpu_custom_call.1} parent=23 // pred_check_branch
          %159 = sbr.rel (%p157) target = $region28
        $region27: #{tpu_custom_call.1} parent=23 // pred_region
          %s160 = sand.u32 %s38, 1
          %s161 = scalar_lea.sflag [#allocation4], %s160
          %s162 = sand.u32 %s38, 1
          %s163 = smul.addr %s162, 64
          %s164 = scalar_lea.vmem [#allocation3], %s163
          %s165 = smul.u32 8, %s21
          %s167 = ssub.s32 1024, 1024
          %168 = vsyncadd %s161, %s167
          %s169 = smul.addr %s165, 2
          %s170 = sadd.s32 %s22, %s169
          %s171 = smul.addr %s170, 128
          %s172 = scalar_lea.hbm %s0, %s171
          %s173 = sshll.u32 %s164, 4
          %s174 = int_to_ptr.vmem [resolvable:$true] %s173
          %179 = dma.hbm_to_vmem [thread:$0]  %s172, 1024, %s174, %s161, 256, 128, 8
        $region28: #{tpu_custom_call.1} parent=23 // pred_fallthru
          _
      $region24: #{tpu_custom_call.1} parent=5 // pred_fallthru
        _
      %p180 = scmp.le.s32.totalorder 1, %s14
      %p181 = scmp.lt.s32.totalorder %s14, 3
      %p182 = pnand %p180, %p181
      %p183 = pneg %p182
      // Predicated region
      $region29: #{tpu_custom_call.1} parent=5 // pred_check
        _
      $region30: #{tpu_custom_call.1} parent=5 // pred_check_branch
        %185 = sbr.rel (%p182) target = $region32
      $region31: #{tpu_custom_call.1} parent=5 // pred_region
        %s186 = ssub.s32 %s14, 1
        %s187 = sand.u32 %s41, 1
        %s188 = scalar_lea.sflag [#allocation4], %s187
        %s189 = sand.u32 %s41, 1
        %s190 = smul.addr %s189, 64
        %s191 = scalar_lea.vmem [#allocation3], %s190
        // Predicated region
        $region33: #{tpu_custom_call.1} parent=31 // pred_check
          %p192 = pneg %p54
        $region34: #{tpu_custom_call.1} parent=31 // pred_check_branch
          %194 = sbr.rel (%p192) target = $region36
        $region35: #{tpu_custom_call.1} parent=31 // pred_region
          %195 = dma.done %s188, 1024
        $region36: #{tpu_custom_call.1} parent=31 // pred_fallthru
          _
        // Predicated region
        $region37: #{tpu_custom_call.1} parent=31 // pred_check
          %p196 = pneg %p75
        $region38: #{tpu_custom_call.1} parent=31 // pred_check_branch
          %198 = sbr.rel (%p196) target = $region40
        $region39: #{tpu_custom_call.1} parent=31 // pred_region
          %199 = dma.done [#allocation7], 2048
        $region40: #{tpu_custom_call.1} parent=31 // pred_fallthru
          _
        %s200 = sand.u32 %s41, 1
        %s201 = scalar_lea.sflag [#allocation4], %s200
        %s202 = sand.u32 %s41, 1
        %s203 = smul.addr %s202, 64
        %s204 = scalar_lea.vmem [#allocation3], %s203
        %p205 = pneg %p54
        %p206 = pneg %p51
        %p207 = pneg %p75
        %p208 = pneg %p72
        %p209 = pneg %p96
        %p210 = pneg %p93
        %p211 = pneg %p122
        %p212 = pneg %p119
        %s213 = smul.u32 8, %s23
        %p214 = scmp.eq.s32.totalorder %s24, 0
        // Predicated region
        $region41: #{tpu_custom_call.1} parent=31 // pred_check
          %p215 = pneg %p214
        $region42: #{tpu_custom_call.1} parent=31 // pred_check_branch
          %217 = sbr.rel (%p215) target = $region44
        $region43: #{tpu_custom_call.1} parent=31 // pred_region
          %218 = vst [vmem:[#allocation2] sm:$0xff] 0.0
        $region44: #{tpu_custom_call.1} parent=31 // pred_fallthru
          _
        %v219 = vld [vmem:[#allocation2] sm:$0xff]
        %v220 = vld [vmem:[%s191] sm:$0xff]
        %v221 = vld [vmem:[%s191 + $0x8] sm:$0xff]
        %v222 = vld [vmem:[%s191 + $0x10] sm:$0xff]
        %v223 = vld [vmem:[%s191 + $0x18] sm:$0xff]
        %v224 = vld [vmem:[%s191 + $0x20] sm:$0xff]
        %v225 = vld [vmem:[%s191 + $0x28] sm:$0xff]
        %v226 = vld [vmem:[%s191 + $0x30] sm:$0xff]
        %v227 = vld [vmem:[%s191 + $0x38] sm:$0xff]
        %v228 = vrot.slane %v220, 4
        %v229 = vadd.f32 %v220, %v228
        %v230 = vrot.slane %v229, 2
        %v231 = vadd.f32 %v229, %v230
        %v232 = vrot.slane %v231, 1
        %v233 = vadd.f32 %v231, %v232
        %v234 = vrot.slane %v221, 4
        %v235 = vadd.f32 %v221, %v234
        %v236 = vrot.slane %v235, 2
        %v237 = vadd.f32 %v235, %v236
        %v238 = vrot.slane %v237, 1
        %v239 = vadd.f32 %v237, %v238
        %v240 = vrot.slane %v222, 4
        %v241 = vadd.f32 %v222, %v240
        %v242 = vrot.slane %v241, 2
        %v243 = vadd.f32 %v241, %v242
        %v244 = vrot.slane %v243, 1
        %v245 = vadd.f32 %v243, %v244
        %v246 = vrot.slane %v223, 4
        %v247 = vadd.f32 %v223, %v246
        %v248 = vrot.slane %v247, 2
        %v249 = vadd.f32 %v247, %v248
        %v250 = vrot.slane %v249, 1
        %v251 = vadd.f32 %v249, %v250
        %v252 = vrot.slane %v224, 4
        %v253 = vadd.f32 %v224, %v252
        %v254 = vrot.slane %v253, 2
        %v255 = vadd.f32 %v253, %v254
        %v256 = vrot.slane %v255, 1
        %v257 = vadd.f32 %v255, %v256
        %v258 = vrot.slane %v225, 4
        %v259 = vadd.f32 %v225, %v258
        %v260 = vrot.slane %v259, 2
        %v261 = vadd.f32 %v259, %v260
        %v262 = vrot.slane %v261, 1
        %v263 = vadd.f32 %v261, %v262
        %v264 = vrot.slane %v226, 4
        %v265 = vadd.f32 %v226, %v264
        %v266 = vrot.slane %v265, 2
        %v267 = vadd.f32 %v265, %v266
        %v268 = vrot.slane %v267, 1
        %v269 = vadd.f32 %v267, %v268
        %v270 = vrot.slane %v227, 4
        %v271 = vadd.f32 %v227, %v270
        %v272 = vrot.slane %v271, 2
        %v273 = vadd.f32 %v271, %v272
        %v274 = vrot.slane %v273, 1
        %v275 = vadd.f32 %v273, %v274
        %vm284 = vcmask 1041409
        %v285 = vsel %vm284, %v239, %v233
        %vm286 = vcmask 1042434
        %v287 = vsel %vm286, %v245, %v285
        %vm288 = vcmask 1043459
        %v289 = vsel %vm288, %v251, %v287
        %vm290 = vcmask 1044484
        %v291 = vsel %vm290, %v257, %v289
        %vm292 = vcmask 1045509
        %v293 = vsel %vm292, %v263, %v291
        %vm294 = vcmask 1046534
        %v295 = vsel %vm294, %v269, %v293
        %vm296 = vcmask 1047559
        %v297 = vsel %vm296, %v275, %v295
        %v299 = vadd.f32 %v219, %v297
        %300 = vst [vmem:[#allocation2] sm:$0xff] %v299
        %p301 = scmp.eq.s32.totalorder %s24, 1
        // Predicated region
        $region45: #{tpu_custom_call.1} parent=31 // pred_check
          %p302 = pneg %p301
        $region46: #{tpu_custom_call.1} parent=31 // pred_check_branch
          %304 = sbr.rel (%p302) target = $region48
        $region47: #{tpu_custom_call.1} parent=31 // pred_region
          %v305 = vld [vmem:[#allocation2] sm:$0xff]
          %v306 = vmul.f32 %v305, 0.0625
          %v307 = vld [vmem:[#allocation6] sm:$0xff]
          %v308 = vld [vmem:[#allocation6 + $0x8] sm:$0xff]
          %v309 = vld [vmem:[#allocation6 + $0x10] sm:$0xff]
          %v310 = vld [vmem:[#allocation6 + $0x18] sm:$0xff]
          %v311 = vld [vmem:[#allocation6 + $0x20] sm:$0xff]
          %v312 = vld [vmem:[#allocation6 + $0x28] sm:$0xff]
          %v313 = vld [vmem:[#allocation6 + $0x30] sm:$0xff]
          %v314 = vld [vmem:[#allocation6 + $0x38] sm:$0xff]
          %v315 = vld [vmem:[#allocation6 + $0x40] sm:$0xff]
          %v316 = vld [vmem:[#allocation6 + $0x48] sm:$0xff]
          %v317 = vld [vmem:[#allocation6 + $0x50] sm:$0xff]
          %v318 = vld [vmem:[#allocation6 + $0x58] sm:$0xff]
          %v319 = vld [vmem:[#allocation6 + $0x60] sm:$0xff]
          %v320 = vld [vmem:[#allocation6 + $0x68] sm:$0xff]
          %v321 = vld [vmem:[#allocation6 + $0x70] sm:$0xff]
          %v322 = vld [vmem:[#allocation6 + $0x78] sm:$0xff]
          %v323 = vld [vmem:[%s2] sm:$0x1]
          %v325 = vlaneseq
          %v326 = vshrl.u32 %v325, 7
          %v327 = vsub.s32 0, %v326
          %v328 = vrot.slane %v323, %v327
          %330 = vmatprep.subr.mxu0 0.0
          %331 = vmatpush1.msra.mxu0 %v322
          %332 = vmatprep.subr.mxu0 0.0
          %333 = vmatpush1.msra.mxu0 %v321
          %334 = vmatprep.subr.mxu0 0.0
          %335 = vmatpush1.msra.mxu0 %v320
          %336 = vmatprep.subr.mxu0 0.0
          %337 = vmatpush1.msra.mxu0 %v319
          %338 = vmatprep.subr.mxu0 0.0
          %339 = vmatpush1.msra.mxu0 %v318
          %340 = vmatprep.subr.mxu0 0.0
          %341 = vmatpush1.msra.mxu0 %v317
          %342 = vmatprep.subr.mxu0 0.0
          %343 = vmatpush1.msra.mxu0 %v316
          %344 = vmatprep.subr.mxu0 0.0
          %345 = vmatpush1.msra.mxu0 %v315
          %346 = vmatprep.subr.mxu0 0.0
          %347 = vmatpush1.msra.mxu0 %v314
          %348 = vmatprep.subr.mxu0 0.0
          %349 = vmatpush1.msra.mxu0 %v313
          %350 = vmatprep.subr.mxu0 0.0
          %351 = vmatpush1.msra.mxu0 %v312
          %352 = vmatprep.subr.mxu0 0.0
          %353 = vmatpush1.msra.mxu0 %v311
          %354 = vmatprep.subr.mxu0 0.0
          %355 = vmatpush1.msra.mxu0 %v310
          %356 = vmatprep.subr.mxu0 0.0
          %357 = vmatpush1.msra.mxu0 %v309
          %358 = vmatprep.subr.mxu0 0.0
          %359 = vmatpush1.msra.mxu0 %v308
          %360 = vmatprep.subr.mxu0 0.0
          %361 = vmatpush1.msra.mxu0 %v307
          %362 = vmatprep.subr.mxu0 0.0
          %363 = vmatpush2.msra.mxu0 0.0
          %364 = vmatprep.subr.mxu0 0.0
          %365 = vmatpush2.msra.mxu0 0.0
          %366 = vmatprep.subr.mxu0 0.0
          %367 = vmatpush2.msra.mxu0 0.0
          %368 = vmatprep.subr.mxu0 0.0
          %369 = vmatpush2.msra.mxu0 0.0
          %370 = vmatprep.subr.mxu0 0.0
          %371 = vmatpush2.msra.mxu0 0.0
          %372 = vmatprep.subr.mxu0 0.0
          %373 = vmatpush2.msra.mxu0 0.0
          %374 = vmatprep.subr.mxu0 0.0
          %375 = vmatpush2.msra.mxu0 0.0
          %376 = vmatprep.subr.mxu0 0.0
          %377 = vmatpush2.msra.mxu0 0.0
          %378 = vmatprep.subr.mxu0 0.0
          %379 = vmatpush2.msra.mxu0 0.0
          %380 = vmatprep.subr.mxu0 0.0
          %381 = vmatpush2.msra.mxu0 0.0
          %382 = vmatprep.subr.mxu0 0.0
          %383 = vmatpush2.msra.mxu0 0.0
          %384 = vmatprep.subr.mxu0 0.0
          %385 = vmatpush2.msra.mxu0 0.0
          %386 = vmatprep.subr.mxu0 0.0
          %387 = vmatpush2.msra.mxu0 0.0
          %388 = vmatprep.subr.mxu0 0.0
          %389 = vmatpush2.msra.mxu0 0.0
          %390 = vmatprep.subr.mxu0 0.0
          %391 = vmatpush2.msra.mxu0 0.0
          %392 = vmatprep.subr.mxu0 0.0
          %393 = vmatpush2.msra.mxu0 0.0
          %394 = vmatprep.mubr.f32.mxu0 0.0
          %395 = vmatmul.mubr.f32.gmra.mxu0 %v306
          %v396 = vpop.f32.mrf.mxu0
          %v397 = vadd.f32 %v328, %v396
          %v398 = vpop.f32.mrf.mxu0
          %399 = vdwg.mxu0
          %400 = vst [vmem:[#allocation8] sm:$0xff] %v397
        $region48: #{tpu_custom_call.1} parent=31 // pred_fallthru
          _
        // Predicated region
        $region49: #{tpu_custom_call.1} parent=31 // pred_check
          %p401 = pneg %p119
        $region50: #{tpu_custom_call.1} parent=31 // pred_check_branch
          %403 = sbr.rel (%p401) target = $region52
        $region51: #{tpu_custom_call.1} parent=31 // pred_region
          %s405 = ssub.s32 128, 128
          %406 = vsyncadd [#allocation5], %s405
          %s407 = smul.addr %s23, 128
          %s408 = scalar_lea.hbm %s3, %s407
          %s410 = sshll.u32 [#allocation8], 4
          %s411 = int_to_ptr.vmem [resolvable:$true] %s410
          %413 = dma.vmem_to_hbm [thread:$0]  %s411, 128, %s408, [#allocation5]
        $region52: #{tpu_custom_call.1} parent=31 // pred_fallthru
          _
        // Predicated region
        $region53: #{tpu_custom_call.1} parent=31 // pred_check
          %p414 = pneg %p119
        $region54: #{tpu_custom_call.1} parent=31 // pred_check_branch
          %416 = sbr.rel (%p414) target = $region56
        $region55: #{tpu_custom_call.1} parent=31 // pred_region
          %417 = dma.done [#allocation5], 128
        $region56: #{tpu_custom_call.1} parent=31 // pred_fallthru
          _
      $region32: #{tpu_custom_call.1} parent=5 // pred_fallthru
        _
      %p418 = scmp.le.s32.totalorder 2, %s14
      // Predicated region
      $region57: #{tpu_custom_call.1} parent=5 // pred_check
        %p419 = pneg %p418
      $region58: #{tpu_custom_call.1} parent=5 // pred_check_branch
        %421 = sbr.rel (%p419) target = $region60
      $region59: #{tpu_custom_call.1} parent=5 // pred_region
        %s422 = ssub.s32 %s14, 2
      $region60: #{tpu_custom_call.1} parent=5 // pred_fallthru
        _
    $region6: #{tpu_custom_call.1} parent=1 // loop_footer
      %s18 = sadd.s32 1, %s14
    $region7: #{tpu_custom_call.1} parent=1 // loop_footer_branch
      %13 = sbr.rel target = $region3
    $region8: #{tpu_custom_call.1} parent=1 // loop_exit
      _
    %423 = vsyncpa [#allocation4], 1
    %s424 = scalar_lea.sflag [#allocation4], 1
    %425 = vsyncpa %s424, 1
    %426 = vsyncpa [#allocation7], 1
    %427 = vsyncpa [#allocation5], 1
    %s428 = scalar_lea.sflag [#allocation5], 1
    %429 = vsyncpa %s428, 1

// kernel: tpu_custom_call.1
$region0: #{tpu_custom_call.1}
  #allocation0 [shape = 'u32[]', space=smem, size = 0x4, offset = 0x4, fixed_abs, tag = 'smem constant byte address 0x4 - core index']
  #allocation1 [shape = 'u32[144,128]{1,0:T(1,128)}', space=vmem, size = 0x12000, scoped, tag = 'internal scratch']
  #allocation2 [shape = 'f32[8,128]{1,0:T(8,128)}', space=vmem, size = 0x1000, scoped, tag = 'scratch operand']
  %s0 = inlined_call_operand.hbm [shape: f32[8,16,128], index: 0, kind: input, shape index: {}]
  %s1 = inlined_call_operand.hbm [shape: f32[128,128], index: 1, kind: input, shape index: {}]
  %s2 = inlined_call_operand.vmem [shape: f32[1,128], index: 2, kind: input, shape index: {}]
  %s3 = inlined_call_operand.hbm [shape: f32[8,128], index: 3, kind: output, shape index: {}]
  %s4 = sld [smem:[#allocation0]]
  $region61: #{tpu_custom_call.1} parent=0
    _
  %s6 = ssub.s32 1, %s4
  %s7 = scalar_select 0, %s6, %s4
  $region1: #{tpu_custom_call.1} parent=0
    #allocation3 [shape = 'u8[65536]{0}', space=vmem, size = 0x10000, scoped, tag = 'input window, operand 0']
    #allocation4 [shape = 's32[2]{0}', space=sflag, size = 0x8, scoped, tag = 'scoped memory for tpu_custom_call.1']
    #allocation5 [shape = 's32[2]{0}', space=sflag, size = 0x8, scoped, tag = 'scoped memory for tpu_custom_call.1']
    #allocation6 [shape = 'u8[65536]{0}', space=vmem, size = 0x10000, scoped, tag = 'input window, operand 1, single buffered']
    #allocation7 [shape = 's32[1]{0}', space=sflag, size = 0x4, scoped, tag = 'scoped memory for tpu_custom_call.1']
    #allocation8 [shape = 'u8[4096]{0}', space=vmem, size = 0x1000, scoped, tag = 'output window, operand 0, single buffered']
    %8 = vsyncpa [#allocation4], 0
    %s9 = scalar_lea.sflag [#allocation4], 1
    %10 = vsyncpa %s9, 0
    %11 = vsyncpa [#allocation7], 0
    %12 = vsyncpa [#allocation5], 0
    loop: start=0, step=1, limit=4
    $region2: #{tpu_custom_call.1} parent=1 // loop_pre_header
      _
    $region3: #{tpu_custom_call.1} parent=1 // loop_header
      %s14 = sphi 0, %s18
      %p15 = scmp.ge.s32.totalorder %s14, 4
      %s21 = sphi 0, %s33
      %s22 = sphi 0, %s29
      %s23 = sphi 0, %s21
      %s24 = sphi 0, %s22
      %s25 = sphi 0, %s23
      %s26 = sphi 0, %s24
      %s38 = sphi 0, %s40
      %s41 = sphi 0, %s38
      %s42 = sphi 0, %s41
      %s58 = sphi 0, %s42
      %s62 = sphi 0, %s62
      %s64 = sphi 0, %s62
      %s65 = sphi 0, %s64
      %s79 = sphi 0, %s65
      %s83 = sphi 0, %s83
      %s85 = sphi 0, %s83
      %s86 = sphi 0, %s85
      %s100 = sphi 0, %s86
      %s106 = sphi 0, %s108
      %s109 = sphi 0, %s106
      %s110 = sphi 0, %s109
      %s126 = sphi 0, %s110
    $region4: #{tpu_custom_call.1} parent=1 // loop_header_branch
      %17 = sbr.rel (%p15) target = $region8
    $region5: #{tpu_custom_call.1} parent=1 // loop_body
      %s19 = ssub.s32 %s14, 1
      %s20 = ssub.s32 %s14, 2
      %s27 = sadd.s32 1, %s22
      %p28 = scmp.ge.s32.totalorder %s27, 2
      %s29 = scalar_select %p28, 0, %s27
      %s30 = sadd.s32 1, %s21
      %s31 = scalar_select %p28, %s30, %s21
      %p32 = scmp.ge.s32.totalorder %s31, 1
      %s33 = scalar_select %p32, 0, %s31
      %s34 = ssub.s32 %s21, %s33
      %s35 = ssub.s32 %s22, %s29
      %s36 = sor.u32 %s34, %s35
      %p37 = scmp.eq.s32.totalorder %s36, 0
      %s39 = sadd.s32 %s38, 1
      %s40 = scalar_select %p37, %s38, %s39
      %p43 = pneg %p37
      %p44 = scmp.eq.s32.totalorder %s14, 1
      %p45 = por %p43, %p44
      %p46 = scmp.ne.s32.totalorder %s38, %s41
      %p47 = scmp.eq.s32.totalorder %s14, 0
      %p48 = por %p46, %p47
      %p49 = scmp.ne.s32.totalorder %s38, %s41
      %p50 = scmp.eq.s32.totalorder %s19, 1
      %p51 = por %p49, %p50
      %p52 = scmp.ne.s32.totalorder %s41, %s42
      %p53 = scmp.eq.s32.totalorder %s19, 0
      %p54 = por %p52, %p53
      %p55 = scmp.ne.s32.totalorder %s41, %s42
      %p56 = scmp.eq.s32.totalorder %s20, 1
      %p57 = por %p55, %p56
      %p59 = scmp.ne.s32.totalorder %s42, %s58
      %p60 = scmp.eq.s32.totalorder %s20, 0
      %p61 = por %p59, %p60
      %s63 = sadd.s32 %s62, 1
      %p66 = scmp.eq.s32.totalorder %s14, 1
      %p67 = scmp.ne.s32.totalorder %s62, %s64
      %p68 = scmp.eq.s32.totalorder %s14, 0
      %p69 = por %p67, %p68
      %p70 = scmp.ne.s32.totalorder %s62, %s64
      %p71 = scmp.eq.s32.totalorder %s19, 1
      %p72 = por %p70, %p71
      %p73 = scmp.ne.s32.totalorder %s64, %s65
      %p74 = scmp.eq.s32.totalorder %s19, 0
      %p75 = por %p73, %p74
      %p76 = scmp.ne.s32.totalorder %s64, %s65
      %p77 = scmp.eq.s32.totalorder %s20, 1
      %p78 = por %p76, %p77
      %p80 = scmp.ne.s32.totalorder %s65, %s79
      %p81 = scmp.eq.s32.totalorder %s20, 0
      %p82 = por %p80, %p81
      %s84 = sadd.s32 %s83, 1
      %p87 = scmp.eq.s32.totalorder %s14, 1
      %p88 = scmp.ne.s32.totalorder %s83, %s85
      %p89 = scmp.eq.s32.totalorder %s14, 0
      %p90 = por %p88, %p89
      %p91 = scmp.ne.s32.totalorder %s83, %s85
      %p92 = scmp.eq.s32.totalorder %s19, 1
      %p93 = por %p91, %p92
      %p94 = scmp.ne.s32.totalorder %s85, %s86
      %p95 = scmp.eq.s32.totalorder %s19, 0
      %p96 = por %p94, %p95
      %p97 = scmp.ne.s32.totalorder %s85, %s86
      %p98 = scmp.eq.s32.totalorder %s20, 1
      %p99 = por %p97, %p98
      %p101 = scmp.ne.s32.totalorder %s86, %s100
      %p102 = scmp.eq.s32.totalorder %s20, 0
      %p103 = por %p101, %p102
      %s104 = ssub.s32 %s21, %s33
      %p105 = scmp.eq.s32.totalorder %s104, 0
      %s107 = sadd.s32 %s106, 1
      %s108 = scalar_select %p105, %s106, %s107
      %p111 = pneg %p105
      %p112 = scmp.eq.s32.totalorder %s14, 1
      %p113 = por %p111, %p112
      %p114 = scmp.ne.s32.totalorder %s106, %s109
      %p115 = scmp.eq.s32.totalorder %s14, 0
      %p116 = por %p114, %p115
      %p117 = scmp.ne.s32.totalorder %s106, %s109
      %p118 = scmp.eq.s32.totalorder %s19, 1
      %p119 = por %p117, %p118
      %p120 = scmp.ne.s32.totalorder %s109, %s110
      %p121 = scmp.eq.s32.totalorder %s19, 0
      %p122 = por %p120, %p121
      %p123 = scmp.ne.s32.totalorder %s109, %s110
      %p124 = scmp.eq.s32.totalorder %s20, 1
      %p125 = por %p123, %p124
      %p127 = scmp.ne.s32.totalorder %s110, %s126
      %p128 = scmp.eq.s32.totalorder %s20, 0
      %p129 = por %p127, %p128
      %p130 = scmp.le.s32.totalorder 1, %s14
      %p131 = scmp.lt.s32.totalorder %s14, 3
      %p132 = pnand %p130, %p131
      %p133 = pneg %p132
      // Predicated region
      $region9: #{tpu_custom_call.1} parent=5 // pred_check
        _
      $region10: #{tpu_custom_call.1} parent=5 // pred_check_branch
        %135 = sbr.rel (%p132) target = $region12
      $region11: #{tpu_custom_call.1} parent=5 // pred_region
        %s136 = ssub.s32 %s14, 1
        // Predicated region
        $region13: #{tpu_custom_call.1} parent=11 // pred_check
          %p137 = pneg %p75
        $region14: #{tpu_custom_call.1} parent=11 // pred_check_branch
          %139 = sbr.rel (%p137) target = $region16
        $region15: #{tpu_custom_call.1} parent=11 // pred_region
          %s141 = ssub.s32 2048, 2048
          %142 = vsyncadd [#allocation7], %s141
          %s143 = sshll.u32 [#allocation6], 4
          %s144 = int_to_ptr.vmem [resolvable:$true] %s143
          %149 = dma.hbm_to_vmem [thread:$0]  %s1, 2048, %s144, [#allocation7], 128, 128, 8
        $region16: #{tpu_custom_call.1} parent=11 // pred_fallthru
          _
        // Predicated region
        $region17: #{tpu_custom_call.1} parent=11 // pred_check
          %p150 = pneg %p96
        $region18: #{tpu_custom_call.1} parent=11 // pred_check_branch
          %152 = sbr.rel (%p150) target = $region20
        $region19: #{tpu_custom_call.1} parent=11 // pred_region
          _
        $region20: #{tpu_custom_call.1} parent=11 // pred_fallthru
          _
      $region12: #{tpu_custom_call.1} parent=5 // pred_fallthru
        _
      %p153 = scmp.lt.s32.totalorder %s14, 2
      // Predicated region
      $region21: #{tpu_custom_call.1} parent=5 // pred_check
        %p154 = pneg %p153
      $region22: #{tpu_custom_call.1} parent=5 // pred_check_branch
        %156 = sbr.rel (%p154) target = $region24
      $region23: #{tpu_custom_call.1} parent=5 // pred_region
        // Predicated region
        $region25: #{tpu_custom_call.1} parent=23 // pred_check
          %p157 = pneg %p48
        $region26: #{tpu_custom_call.1} parent=23 // pred_check_branch
          %159 = sbr.rel (%p157) target = $region28
        $region27: #{tpu_custom_call.1} parent=23 // pred_region
          %s160 = sand.u32 %s38, 1
          %s161 = scalar_lea.sflag [#allocation4], %s160
          %s162 = sand.u32 %s38, 1
          %s163 = smul.addr %s162, 64
          %s164 = scalar_lea.vmem [#allocation3], %s163
          %s165 = smul.u32 8, %s21
          %s167 = ssub.s32 1024, 1024
          %168 = vsyncadd %s161, %s167
          %s169 = smul.addr %s165, 2
          %s170 = sadd.s32 %s22, %s169
          %s171 = smul.addr %s170, 128
          %s172 = scalar_lea.hbm %s0, %s171
          %s173 = sshll.u32 %s164, 4
          %s174 = int_to_ptr.vmem [resolvable:$true] %s173
          %179 = dma.hbm_to_vmem [thread:$0]  %s172, 1024, %s174, %s161, 256, 128, 8
        $region28: #{tpu_custom_call.1} parent=23 // pred_fallthru
          _
      $region24: #{tpu_custom_call.1} parent=5 // pred_fallthru
        _
      %p180 = scmp.le.s32.totalorder 1, %s14
      %p181 = scmp.lt.s32.totalorder %s14, 3
      %p182 = pnand %p180, %p181
      %p183 = pneg %p182
      // Predicated region
      $region29: #{tpu_custom_call.1} parent=5 // pred_check
        _
      $region30: #{tpu_custom_call.1} parent=5 // pred_check_branch
        %185 = sbr.rel (%p182) target = $region32
      $region31: #{tpu_custom_call.1} parent=5 // pred_region
        %s186 = ssub.s32 %s14, 1
        %s187 = sand.u32 %s41, 1
        %s188 = scalar_lea.sflag [#allocation4], %s187
        %s189 = sand.u32 %s41, 1
        %s190 = smul.addr %s189, 64
        %s191 = scalar_lea.vmem [#allocation3], %s190
        // Predicated region
        $region33: #{tpu_custom_call.1} parent=31 // pred_check
          %p192 = pneg %p54
        $region34: #{tpu_custom_call.1} parent=31 // pred_check_branch
          %194 = sbr.rel (%p192) target = $region36
        $region35: #{tpu_custom_call.1} parent=31 // pred_region
          %195 = dma.done %s188, 1024
        $region36: #{tpu_custom_call.1} parent=31 // pred_fallthru
          _
        // Predicated region
        $region37: #{tpu_custom_call.1} parent=31 // pred_check
          %p196 = pneg %p75
        $region38: #{tpu_custom_call.1} parent=31 // pred_check_branch
          %198 = sbr.rel (%p196) target = $region40
        $region39: #{tpu_custom_call.1} parent=31 // pred_region
          %199 = dma.done [#allocation7], 2048
        $region40: #{tpu_custom_call.1} parent=31 // pred_fallthru
          _
        %s200 = sand.u32 %s41, 1
        %s201 = scalar_lea.sflag [#allocation4], %s200
        %s202 = sand.u32 %s41, 1
        %s203 = smul.addr %s202, 64
        %s204 = scalar_lea.vmem [#allocation3], %s203
        %p205 = pneg %p54
        %p206 = pneg %p51
        %p207 = pneg %p75
        %p208 = pneg %p72
        %p209 = pneg %p96
        %p210 = pneg %p93
        %p211 = pneg %p122
        %p212 = pneg %p119
        %s213 = smul.u32 8, %s23
        %p214 = scmp.eq.s32.totalorder %s24, 0
        // Predicated region
        $region41: #{tpu_custom_call.1} parent=31 // pred_check
          %p215 = pneg %p214
        $region42: #{tpu_custom_call.1} parent=31 // pred_check_branch
          %217 = sbr.rel (%p215) target = $region44
        $region43: #{tpu_custom_call.1} parent=31 // pred_region
          %218 = vst [vmem:[#allocation2] sm:$0xff] 0.0
        $region44: #{tpu_custom_call.1} parent=31 // pred_fallthru
          _
        %v219 = vld [vmem:[#allocation2] sm:$0xff]
        %v220 = vld [vmem:[%s191] sm:$0xff]
        %v221 = vld [vmem:[%s191 + $0x8] sm:$0xff]
        %v222 = vld [vmem:[%s191 + $0x10] sm:$0xff]
        %v223 = vld [vmem:[%s191 + $0x18] sm:$0xff]
        %v224 = vld [vmem:[%s191 + $0x20] sm:$0xff]
        %v225 = vld [vmem:[%s191 + $0x28] sm:$0xff]
        %v226 = vld [vmem:[%s191 + $0x30] sm:$0xff]
        %v227 = vld [vmem:[%s191 + $0x38] sm:$0xff]
        %v228 = vrot.slane %v220, 4
        %v229 = vadd.f32 %v220, %v228
        %v230 = vrot.slane %v229, 2
        %v231 = vadd.f32 %v229, %v230
        %v232 = vrot.slane %v231, 1
        %v233 = vadd.f32 %v231, %v232
        %v234 = vrot.slane %v221, 4
        %v235 = vadd.f32 %v221, %v234
        %v236 = vrot.slane %v235, 2
        %v237 = vadd.f32 %v235, %v236
        %v238 = vrot.slane %v237, 1
        %v239 = vadd.f32 %v237, %v238
        %v240 = vrot.slane %v222, 4
        %v241 = vadd.f32 %v222, %v240
        %v242 = vrot.slane %v241, 2
        %v243 = vadd.f32 %v241, %v242
        %v244 = vrot.slane %v243, 1
        %v245 = vadd.f32 %v243, %v244
        %v246 = vrot.slane %v223, 4
        %v247 = vadd.f32 %v223, %v246
        %v248 = vrot.slane %v247, 2
        %v249 = vadd.f32 %v247, %v248
        %v250 = vrot.slane %v249, 1
        %v251 = vadd.f32 %v249, %v250
        %v252 = vrot.slane %v224, 4
        %v253 = vadd.f32 %v224, %v252
        %v254 = vrot.slane %v253, 2
        %v255 = vadd.f32 %v253, %v254
        %v256 = vrot.slane %v255, 1
        %v257 = vadd.f32 %v255, %v256
        %v258 = vrot.slane %v225, 4
        %v259 = vadd.f32 %v225, %v258
        %v260 = vrot.slane %v259, 2
        %v261 = vadd.f32 %v259, %v260
        %v262 = vrot.slane %v261, 1
        %v263 = vadd.f32 %v261, %v262
        %v264 = vrot.slane %v226, 4
        %v265 = vadd.f32 %v226, %v264
        %v266 = vrot.slane %v265, 2
        %v267 = vadd.f32 %v265, %v266
        %v268 = vrot.slane %v267, 1
        %v269 = vadd.f32 %v267, %v268
        %v270 = vrot.slane %v227, 4
        %v271 = vadd.f32 %v227, %v270
        %v272 = vrot.slane %v271, 2
        %v273 = vadd.f32 %v271, %v272
        %v274 = vrot.slane %v273, 1
        %v275 = vadd.f32 %v273, %v274
        %vm284 = vcmask 1041409
        %v285 = vsel %vm284, %v239, %v233
        %vm286 = vcmask 1042434
        %v287 = vsel %vm286, %v245, %v285
        %vm288 = vcmask 1043459
        %v289 = vsel %vm288, %v251, %v287
        %vm290 = vcmask 1044484
        %v291 = vsel %vm290, %v257, %v289
        %vm292 = vcmask 1045509
        %v293 = vsel %vm292, %v263, %v291
        %vm294 = vcmask 1046534
        %v295 = vsel %vm294, %v269, %v293
        %vm296 = vcmask 1047559
        %v297 = vsel %vm296, %v275, %v295
        %v299 = vadd.f32 %v219, %v297
        %300 = vst [vmem:[#allocation2] sm:$0xff] %v299
        %p301 = scmp.eq.s32.totalorder %s24, 1
        // Predicated region
        $region45: #{tpu_custom_call.1} parent=31 // pred_check
          %p302 = pneg %p301
        $region46: #{tpu_custom_call.1} parent=31 // pred_check_branch
          %304 = sbr.rel (%p302) target = $region48
        $region47: #{tpu_custom_call.1} parent=31 // pred_region
          %v305 = vld [vmem:[#allocation2] sm:$0xff]
          %v306 = vmul.f32 %v305, 0.0625
          %v307 = vld [vmem:[#allocation6] sm:$0xff]
          %v308 = vld [vmem:[#allocation6 + $0x8] sm:$0xff]
          %v309 = vld [vmem:[#allocation6 + $0x10] sm:$0xff]
          %v310 = vld [vmem:[#allocation6 + $0x18] sm:$0xff]
          %v311 = vld [vmem:[#allocation6 + $0x20] sm:$0xff]
          %v312 = vld [vmem:[#allocation6 + $0x28] sm:$0xff]
          %v313 = vld [vmem:[#allocation6 + $0x30] sm:$0xff]
          %v314 = vld [vmem:[#allocation6 + $0x38] sm:$0xff]
          %v315 = vld [vmem:[#allocation6 + $0x40] sm:$0xff]
          %v316 = vld [vmem:[#allocation6 + $0x48] sm:$0xff]
          %v317 = vld [vmem:[#allocation6 + $0x50] sm:$0xff]
          %v318 = vld [vmem:[#allocation6 + $0x58] sm:$0xff]
          %v319 = vld [vmem:[#allocation6 + $0x60] sm:$0xff]
          %v320 = vld [vmem:[#allocation6 + $0x68] sm:$0xff]
          %v321 = vld [vmem:[#allocation6 + $0x70] sm:$0xff]
          %v322 = vld [vmem:[#allocation6 + $0x78] sm:$0xff]
          %v323 = vld [vmem:[%s2] sm:$0x1]
          %v325 = vlaneseq
          %v326 = vshrl.u32 %v325, 7
          %v327 = vsub.s32 0, %v326
          %v328 = vrot.slane %v323, %v327
          %330 = vmatprep.subr.mxu0 0.0
          %331 = vmatpush1.msra.mxu0 %v322
          %332 = vmatprep.subr.mxu0 0.0
          %333 = vmatpush1.msra.mxu0 %v321
          %334 = vmatprep.subr.mxu0 0.0
          %335 = vmatpush1.msra.mxu0 %v320
          %336 = vmatprep.subr.mxu0 0.0
          %337 = vmatpush1.msra.mxu0 %v319
          %338 = vmatprep.subr.mxu0 0.0
          %339 = vmatpush1.msra.mxu0 %v318
          %340 = vmatprep.subr.mxu0 0.0
          %341 = vmatpush1.msra.mxu0 %v317
          %342 = vmatprep.subr.mxu0 0.0
          %343 = vmatpush1.msra.mxu0 %v316
          %344 = vmatprep.subr.mxu0 0.0
          %345 = vmatpush1.msra.mxu0 %v315
          %346 = vmatprep.subr.mxu0 0.0
          %347 = vmatpush1.msra.mxu0 %v314
          %348 = vmatprep.subr.mxu0 0.0
          %349 = vmatpush1.msra.mxu0 %v313
          %350 = vmatprep.subr.mxu0 0.0
          %351 = vmatpush1.msra.mxu0 %v312
          %352 = vmatprep.subr.mxu0 0.0
          %353 = vmatpush1.msra.mxu0 %v311
          %354 = vmatprep.subr.mxu0 0.0
          %355 = vmatpush1.msra.mxu0 %v310
          %356 = vmatprep.subr.mxu0 0.0
          %357 = vmatpush1.msra.mxu0 %v309
          %358 = vmatprep.subr.mxu0 0.0
          %359 = vmatpush1.msra.mxu0 %v308
          %360 = vmatprep.subr.mxu0 0.0
          %361 = vmatpush1.msra.mxu0 %v307
          %362 = vmatprep.subr.mxu0 0.0
          %363 = vmatpush2.msra.mxu0 0.0
          %364 = vmatprep.subr.mxu0 0.0
          %365 = vmatpush2.msra.mxu0 0.0
          %366 = vmatprep.subr.mxu0 0.0
          %367 = vmatpush2.msra.mxu0 0.0
          %368 = vmatprep.subr.mxu0 0.0
          %369 = vmatpush2.msra.mxu0 0.0
          %370 = vmatprep.subr.mxu0 0.0
          %371 = vmatpush2.msra.mxu0 0.0
          %372 = vmatprep.subr.mxu0 0.0
          %373 = vmatpush2.msra.mxu0 0.0
          %374 = vmatprep.subr.mxu0 0.0
          %375 = vmatpush2.msra.mxu0 0.0
          %376 = vmatprep.subr.mxu0 0.0
          %377 = vmatpush2.msra.mxu0 0.0
          %378 = vmatprep.subr.mxu0 0.0
          %379 = vmatpush2.msra.mxu0 0.0
          %380 = vmatprep.subr.mxu0 0.0
          %381 = vmatpush2.msra.mxu0 0.0
          %382 = vmatprep.subr.mxu0 0.0
          %383 = vmatpush2.msra.mxu0 0.0
          %384 = vmatprep.subr.mxu0 0.0
          %385 = vmatpush2.msra.mxu0 0.0
          %386 = vmatprep.subr.mxu0 0.0
          %387 = vmatpush2.msra.mxu0 0.0
          %388 = vmatprep.subr.mxu0 0.0
          %389 = vmatpush2.msra.mxu0 0.0
          %390 = vmatprep.subr.mxu0 0.0
          %391 = vmatpush2.msra.mxu0 0.0
          %392 = vmatprep.subr.mxu0 0.0
          %393 = vmatpush2.msra.mxu0 0.0
          %394 = vmatprep.mubr.f32.mxu0 0.0
          %395 = vmatmul.mubr.f32.gmra.mxu0 %v306
          %v396 = vpop.f32.mrf.mxu0
          %v397 = vadd.f32 %v328, %v396
          %v398 = vpop.f32.mrf.mxu0
          %399 = vdwg.mxu0
          %400 = vst [vmem:[#allocation8] sm:$0xff] %v397
        $region48: #{tpu_custom_call.1} parent=31 // pred_fallthru
          _
        // Predicated region
        $region49: #{tpu_custom_call.1} parent=31 // pred_check
          %p401 = pneg %p119
        $region50: #{tpu_custom_call.1} parent=31 // pred_check_branch
          %403 = sbr.rel (%p401) target = $region52
        $region51: #{tpu_custom_call.1} parent=31 // pred_region
          %s405 = ssub.s32 128, 128
          %406 = vsyncadd [#allocation5], %s405
          %s407 = smul.addr %s23, 128
          %s408 = scalar_lea.hbm %s3, %s407
          %s410 = sshll.u32 [#allocation8], 4
          %s411 = int_to_ptr.vmem [resolvable:$true] %s410
          %413 = dma.vmem_to_hbm [thread:$0]  %s411, 128, %s408, [#allocation5]
        $region52: #{tpu_custom_call.1} parent=31 // pred_fallthru
          _
        // Predicated region
        $region53: #{tpu_custom_call.1} parent=31 // pred_check
          %p414 = pneg %p119
        $region54: #{tpu_custom_call.1} parent=31 // pred_check_branch
          %416 = sbr.rel (%p414) target = $region56
        $region55: #{tpu_custom_call.1} parent=31 // pred_region
          %417 = dma.done [#allocation5], 128
        $region56: #{tpu_custom_call.1} parent=31 // pred_fallthru
          _
      $region32: #{tpu_custom_call.1} parent=5 // pred_fallthru
        _
      %p418 = scmp.le.s32.totalorder 2, %s14
      // Predicated region
      $region57: #{tpu_custom_call.1} parent=5 // pred_check
        %p419 = pneg %p418
      $region58: #{tpu_custom_call.1} parent=5 // pred_check_branch
        %421 = sbr.rel (%p419) target = $region60
      $region59: #{tpu_custom_call.1} parent=5 // pred_region
        %s422 = ssub.s32 %s14, 2
      $region60: #{tpu_custom_call.1} parent=5 // pred_fallthru
        _
    $region6: #{tpu_custom_call.1} parent=1 // loop_footer
      %s18 = sadd.s32 1, %s14
    $region7: #{tpu_custom_call.1} parent=1 // loop_footer_branch
      %13 = sbr.rel target = $region3
    $region8: #{tpu_custom_call.1} parent=1 // loop_exit
      _
    %423 = vsyncpa [#allocation4], 1
    %s424 = scalar_lea.sflag [#allocation4], 1
    %425 = vsyncpa %s424, 1
    %426 = vsyncpa [#allocation7], 1
    %427 = vsyncpa [#allocation5], 1
    %s428 = scalar_lea.sflag [#allocation5], 1
    %429 = vsyncpa %s428, 1

</llo_original>
